<compile_context>
chip_gen: v5e
topology: v5e:2x2
jax: 0.10.0
libtpu: 0.0.40
codegen_flags: <defaults>
</compile_context>

<pallas_src>
import functools
import math

import jax
import jax.numpy as jnp
from jax.experimental import pallas as pl
from jax.experimental.pallas import tpu as pltpu


# Per-input-block VMEM budget.  With double buffering this is ~2x per input
# plus the small f32 accumulator and output block, so it stays inside the
# default scoped-VMEM limit on every generation (v5e 16 MiB, v6e/v7x 32 MiB
# scoped) while already sitting on the measured large-tile bandwidth plateau.
_VMEM_BLOCK_BUDGET_BYTES = 2 * 1024 * 1024

# Below this element count the fixed pallas_call + ~0.35us/grid-step overhead
# dominates -> plain jnp.mean is faster.
_MIN_PALLAS_ELEMS = 1 << 15


def _mean_reduce_kernel(x_ref, o_ref, acc_ref, *, inv_l):
    """Grid = (BC tiles [parallel], L tiles [arbitrary / reduction]).

    x_ref:   (TBC, TL, D)   current input tile
    o_ref:   (TBC, D)       output tile (same block for every L step)
    acc_ref: (TBC, D) f32   running sum over L (VMEM scratch, persists across L)
    """
    li = pl.program_id(1)

    @pl.when(li == 0)
    def _init():
        acc_ref[...] = jnp.zeros_like(acc_ref)

    # Accumulate in float32 regardless of the input dtype so bf16/fp16 inputs
    # do not drift over long L.  The per-tile sum over axis 1 is an XLU reduce;
    # this kernel is HBM-bound so that slot has plenty of slack.
    acc_ref[...] += jnp.sum(x_ref[...].astype(jnp.float32), axis=1)

    @pl.when(li == pl.num_programs(1) - 1)
    def _finalize():
        # Scale once at finalize (not per chunk), then cast to the output dtype.
        o_ref[...] = (acc_ref[...] * inv_l).astype(o_ref.dtype)


def _largest_divisor_tile(n, cap, granule):
    """Largest divisor of `n` that is <= cap and a multiple of `granule`.
    Falls back to the full dimension (always a legal BlockSpec block size)."""
    cap = min(n, cap)
    if n <= cap:
        return n
    for t in range(cap, granule - 1, -1):
        if n % t == 0 and t % granule == 0:
            return t
    return n


def _choose_tiles(bc, l, d, itemsize, granule, block_budget_bytes):
    """Pick (TBC, TL) keeping D (the HBM-contiguous lane axis) full."""
    row_bytes = max(1, d * itemsize)  # bytes of one (1, 1, D) row
    # Parallel BC axis: aim for >=2 grid steps once BC is large enough so both
    # v7x TensorCores get balanced work (v5e/v6e have a single TC -> no-op).
    tbc_cap = bc if bc < 2 * granule else max(granule, bc // 2)
    tbc_cap = min(tbc_cap,
                  max(granule, block_budget_bytes // (granule * row_bytes)))
    tbc = _largest_divisor_tile(bc, tbc_cap, granule)
    # Reduction L axis: biggest tile that keeps the block inside the budget so
    # the pipeline stays double-buffered and VMEM-bounded for large C*L*D.
    tl_cap = max(granule, block_budget_bytes // max(1, tbc * row_bytes))
    tl = _largest_divisor_tile(l, tl_cap, granule)
    return tbc, tl


def _lambda_mean_dim2_pallas(x, *, block_budget_bytes=_VMEM_BLOCK_BUDGET_BYTES):
    """Pallas path: mean over axis 2 of an ndim >= 3 array."""
    lead, l, trail = x.shape[:2], x.shape[2], x.shape[3:]
    bc = math.prod(lead)
    d = math.prod(trail) if trail else 1

    # Free (contiguous) fold: (B, C, L, D...) -> (B*C, L, prod(D...)).
    # No HBM transpose is introduced (that would add a full extra HBM pass on a
    # purely bandwidth-bound op); D remains the contiguous lane axis.
    x3 = x.reshape(bc, l, d)

    itemsize = jnp.dtype(x3.dtype).itemsize
    granule = 8 * max(1, 4 // itemsize)  # dtype-adjusted sublane granularity
    tbc, tl = _choose_tiles(bc, l, d, itemsize, granule, block_budget_bytes)
    grid = (bc // tbc, l // tl)

    out3 = pl.pallas_call(
        functools.partial(_mean_reduce_kernel, inv_l=1.0 / l),
        out_shape=jax.ShapeDtypeStruct((bc, d), x.dtype),
        grid=grid,
        in_specs=[pl.BlockSpec((tbc, tl, d), lambda i, li: (i, li, 0))],
        # Same output block for every L step -> it stays resident in VMEM and
        # is written back to HBM exactly once, after the finalize phase.
        out_specs=pl.BlockSpec((tbc, d), lambda i, li: (i, 0)),
        scratch_shapes=[pltpu.VMEM((tbc, d), jnp.float32)],
        compiler_params=pltpu.CompilerParams(
            dimension_semantics=("parallel", "arbitrary")),
    )(x3)

    return out3.reshape(*lead, *trail)


def lambda_mean_dim2(x, *, force_pallas=False):
    """Equivalent of the TBiNet Lambda module: torch.mean(x, dim=2)."""
    if x.ndim < 3:
        raise ValueError("mean over dim=2 requires an input with ndim >= 3")
    if not force_pallas and x.size < _MIN_PALLAS_ELEMS:
        # Tiny tensors: kernel launch + per-grid-step overhead dominates.
        return jnp.mean(x, axis=2)
    return _lambda_mean_dim2_pallas(x)


if __name__ == "__main__":
    key = jax.random.PRNGKey(0)
    k1, k2, k3, k4 = jax.random.split(key, 4)

    # 1) Original small 4-D shape, forced through the Pallas path (one block).
    x1 = jax.random.normal(k1, (2, 4, 16, 16), dtype=jnp.float32)
    o1 = jax.block_until_ready(_lambda_mean_dim2_pallas(x1))
    r1 = jnp.mean(x1, axis=2)
    assert o1.shape == r1.shape, (o1.shape, r1.shape)
    assert jnp.allclose(o1, r1, atol=1e-5, rtol=1e-5)

    # 2) Tiny block budget forces multi-step tiling on both the parallel (B*C)
    #    axis and the reduction (L) axis -> exercises init/accumulate/finalize.
    x2 = jax.random.normal(k2, (2, 8, 80, 16), dtype=jnp.float32)
    o2 = jax.block_until_ready(
        _lambda_mean_dim2_pallas(x2, block_budget_bytes=4096))
    r2 = jnp.mean(x2, axis=2)
    assert o2.shape == r2.shape, (o2.shape, r2.shape)
    assert jnp.allclose(o2, r2, atol=1e-5, rtol=1e-5)

    # 3) bf16 input with lane-dense D=128 and multiple L steps -> float32
    #    accumulation path; compare against a float32 reference.
    x3 = jax.random.normal(k3, (2, 4, 64, 128),
                           dtype=jnp.float32).astype(jnp.bfloat16)
    o3 = jax.block_until_ready(
        _lambda_mean_dim2_pallas(x3, block_budget_bytes=8192))
    r3 = jnp.mean(x3.astype(jnp.float32), axis=2)
    assert o3.shape == r3.shape, (o3.shape, r3.shape)
    assert jnp.allclose(o3.astype(jnp.float32), r3, atol=2e-2, rtol=2e-2)

    # 4) Generic 3-D input through the public wrapper (forced Pallas path).
    x4 = jax.random.normal(k4, (4, 6, 40), dtype=jnp.float32)
    o4 = jax.block_until_ready(lambda_mean_dim2(x4, force_pallas=True))
    r4 = jnp.mean(x4, axis=2)
    assert o4.shape == r4.shape, (o4.shape, r4.shape)
    assert jnp.allclose(o4, r4, atol=1e-5, rtol=1e-5)

    # 5) Tiny-input dispatch falls back to jnp.mean (no Pallas overhead).
    o5 = jax.block_until_ready(lambda_mean_dim2(x1))
    assert jnp.allclose(o5, r1, atol=1e-5, rtol=1e-5)

    print("KERNEL_OK")
</pallas_src>

<mosaic_0001>
module attributes {stable_mosaic.version = 11 : i64} {
  func.func @_mean_reduce_kernel(%arg0: i32, %arg1: i32, %arg2: memref<8x16x16xf32, #tpu.memory_space<vmem>>, %arg3: memref<8x16xf32, #tpu.memory_space<vmem>>, %arg4: memref<8x16xf32, #tpu.memory_space<vmem>>) attributes {dimension_semantics = [#tpu.dimension_semantics<parallel>, #tpu.dimension_semantics<arbitrary>], iteration_bounds = array<i64: 1, 1>, scalar_prefetch = 0 : i64, scratch_operands = 1 : i64, tpu.core_type = #tpu.core_type<tc>, window_params = [{transform_indices = @transform_0, window_bounds = array<i64: 8, 16, 16>}, {transform_indices = @transform_1, window_bounds = array<i64: 8, 16>}]} {
    %c0_i32 = arith.constant 0 : i32
    %0 = arith.cmpi eq, %arg1, %c0_i32 : i32
    %1 = arith.extui %0 : i1 to i32
    %c0_i32_0 = arith.constant 0 : i32
    %2 = arith.cmpi ne, %1, %c0_i32_0 : i32
    scf.if %2 {
      %cst_9 = arith.constant 0.000000e+00 : f32
      %11 = vector.broadcast %cst_9 : f32 to vector<8x16xf32>
      %c0_10 = arith.constant 0 : index
      %c0_11 = arith.constant 0 : index
      %12 = vector.load %arg4[%c0_10, %c0_11] : memref<8x16xf32, #tpu.memory_space<vmem>>, vector<8x16xf32>
      tpu.vector_store %arg4[%c0_10, %c0_11], %11 {strides = array<i32>} : memref<8x16xf32, #tpu.memory_space<vmem>>, vector<8x16xf32>,
    } else {
    }
    %c0 = arith.constant 0 : index
    %c0_1 = arith.constant 0 : index
    %3 = vector.load %arg4[%c0, %c0_1] : memref<8x16xf32, #tpu.memory_space<vmem>>, vector<8x16xf32>
    %c0_2 = arith.constant 0 : index
    %c0_3 = arith.constant 0 : index
    %c0_4 = arith.constant 0 : index
    %4 = vector.load %arg2[%c0_2, %c0_3, %c0_4] : memref<8x16x16xf32, #tpu.memory_space<vmem>>, vector<8x16x16xf32>
    %cst = arith.constant dense<0.000000e+00> : vector<8x16xf32>
    %5 = vector.multi_reduction <add>, %4, %cst [1] : vector<8x16x16xf32> to vector<8x16xf32>
    %6 = arith.addf %3, %5 : vector<8x16xf32>
    %c0_5 = arith.constant 0 : index
    %c0_6 = arith.constant 0 : index
    %7 = vector.load %arg4[%c0_5, %c0_6] : memref<8x16xf32, #tpu.memory_space<vmem>>, vector<8x16xf32>
    tpu.vector_store %arg4[%c0_5, %c0_6], %6 {strides = array<i32>} : memref<8x16xf32, #tpu.memory_space<vmem>>, vector<8x16xf32>,
    %c0_i32_7 = arith.constant 0 : i32
    %8 = arith.cmpi eq, %arg1, %c0_i32_7 : i32
    %9 = arith.extui %8 : i1 to i32
    %c0_i32_8 = arith.constant 0 : i32
    %10 = arith.cmpi ne, %9, %c0_i32_8 : i32
    scf.if %10 {
      %c0_9 = arith.constant 0 : index
      %c0_10 = arith.constant 0 : index
      %11 = vector.load %arg4[%c0_9, %c0_10] : memref<8x16xf32, #tpu.memory_space<vmem>>, vector<8x16xf32>
      %cst_11 = arith.constant 6.250000e-02 : f32
      %12 = vector.broadcast %cst_11 : f32 to vector<8x16xf32>
      %13 = arith.mulf %11, %12 : vector<8x16xf32>
      %c0_12 = arith.constant 0 : index
      %c0_13 = arith.constant 0 : index
      %14 = vector.load %arg3[%c0_12, %c0_13] : memref<8x16xf32, #tpu.memory_space<vmem>>, vector<8x16xf32>
      tpu.vector_store %arg3[%c0_12, %c0_13], %13 {strides = array<i32>} : memref<8x16xf32, #tpu.memory_space<vmem>>, vector<8x16xf32>,
    } else {
    }
    return
  }
  func.func @transform_0(%arg0: i32, %arg1: i32) -> (i32, i32, i32) {
    %c0_i32 = arith.constant 0 : i32
    %c0_i32_0 = arith.constant 0 : i32
    return %arg0, %arg1, %c0_i32 : i32, i32, i32
  }
  func.func @transform_1(%arg0: i32, %arg1: i32) -> (i32, i32) {
    %c0_i32 = arith.constant 0 : i32
    %c0_i32_0 = arith.constant 0 : i32
    return %arg0, %c0_i32 : i32, i32
  }
}

</mosaic_0001>

<llo_original>
// kernel: tpu_custom_call.1
$region0: #{tpu_custom_call.1}
  #allocation0 [shape = 'u32[]', space=smem, size = 0x4, offset = 0x4, fixed_abs, tag = 'smem constant byte address 0x4 - core index']
  #allocation1 [shape = 'u32[72,128]{1,0:T(1,128)}', space=vmem, size = 0x9000, scoped, tag = 'internal scratch']
  #allocation2 [shape = 'f32[8,16]{1,0:T(8,128)}', space=vmem, size = 0x1000, scoped, tag = 'scratch operand']
  %s0 = inlined_call_operand.hbm [shape: f32[8,16,16], index: 0, kind: input, shape index: {}]
  %s1 = inlined_call_operand.hbm [shape: f32[8,16], index: 1, kind: output, shape index: {}]
  %s2 = sld [smem:[#allocation0]]
  $region26: #{tpu_custom_call.1} parent=0
    _
  %s4 = ssub.s32 1, %s2
  %s5 = scalar_select 0, %s4, %s2
  $region1: #{tpu_custom_call.1} parent=0
    #allocation3 [shape = 'u8[65536]{0}', space=vmem, size = 0x10000, scoped, tag = 'input window, operand 0, single buffered']
    #allocation4 [shape = 's32[1]{0}', space=sflag, size = 0x4, scoped, tag = 'scoped memory for tpu_custom_call.1']
    #allocation5 [shape = 's32[1]{0}', space=sflag, size = 0x4, scoped, tag = 'scoped memory for tpu_custom_call.1']
    #allocation6 [shape = 'u8[4096]{0}', space=vmem, size = 0x1000, scoped, tag = 'output window, operand 0, single buffered']
    %6 = vsyncpa [#allocation4], 0
    %7 = vsyncpa [#allocation5], 0
    // Predicated region
    $region2: #{tpu_custom_call.1} parent=1 // pred_check
      _
    $region3: #{tpu_custom_call.1} parent=1 // pred_check_branch
      %9 = sbr.rel (0) target = $region5
    $region4: #{tpu_custom_call.1} parent=1 // pred_region
      %11 = vsyncadd [#allocation4], 0
      %s12 = sshll.u32 %s0, 4
      %s13 = int_to_ptr.hbm [resolvable:$true] %s12
      %s14 = sshll.u32 [#allocation3], 4
      %s15 = int_to_ptr.vmem [resolvable:$true] %s14
      %20 = dma.hbm_to_vmem [thread:$0]  %s13, 2048, %s15, [#allocation4], 128, 128, 8
    $region5: #{tpu_custom_call.1} parent=1 // pred_fallthru
      _
    // Predicated region
    $region6: #{tpu_custom_call.1} parent=1 // pred_check
      _
    $region7: #{tpu_custom_call.1} parent=1 // pred_check_branch
      %22 = sbr.rel (0) target = $region9
    $region8: #{tpu_custom_call.1} parent=1 // pred_region
      %24 = dma.done [#allocation4], 2048
    $region9: #{tpu_custom_call.1} parent=1 // pred_fallthru
      _
    %p25 = scmp.eq.s32.totalorder 0, 0
    // Predicated region
    $region10: #{tpu_custom_call.1} parent=1 // pred_check
      %p26 = pneg %p25
    $region11: #{tpu_custom_call.1} parent=1 // pred_check_branch
      %28 = sbr.rel (%p26) target = $region13
    $region12: #{tpu_custom_call.1} parent=1 // pred_region
      %vm29 = vcmask 130048
      %30 = vst.msk [vmem:[#allocation2] sm:$0xff] %vm29, 0.0
    $region13: #{tpu_custom_call.1} parent=1 // pred_fallthru
      _
    %v31 = vld [vmem:[#allocation2] sm:$0xff]
    %v32 = vld [vmem:[#allocation3] sm:$0xff]
    %v33 = vld [vmem:[#allocation3 + $0x8] sm:$0xff]
    %v34 = vld [vmem:[#allocation3 + $0x10] sm:$0xff]
    %v35 = vld [vmem:[#allocation3 + $0x18] sm:$0xff]
    %v36 = vld [vmem:[#allocation3 + $0x20] sm:$0xff]
    %v37 = vld [vmem:[#allocation3 + $0x28] sm:$0xff]
    %v38 = vld [vmem:[#allocation3 + $0x30] sm:$0xff]
    %v39 = vld [vmem:[#allocation3 + $0x38] sm:$0xff]
    %v40 = vld [vmem:[#allocation3 + $0x40] sm:$0xff]
    %v41 = vld [vmem:[#allocation3 + $0x48] sm:$0xff]
    %v42 = vld [vmem:[#allocation3 + $0x50] sm:$0xff]
    %v43 = vld [vmem:[#allocation3 + $0x58] sm:$0xff]
    %v44 = vld [vmem:[#allocation3 + $0x60] sm:$0xff]
    %v45 = vld [vmem:[#allocation3 + $0x68] sm:$0xff]
    %v46 = vld [vmem:[#allocation3 + $0x70] sm:$0xff]
    %v47 = vld [vmem:[#allocation3 + $0x78] sm:$0xff]
    %vm48 = vcmask 130048
    %v49 = vsel %vm48, %v32, 0.0
    %v50 = vsel %vm48, %v33, 0.0
    %v51 = vadd.f32 %v49, %v50
    %v52 = vrot.slane %v51, 4
    %v53 = vadd.f32 %v51, %v52
    %v54 = vrot.slane %v53, 2
    %v55 = vadd.f32 %v53, %v54
    %v56 = vrot.slane %v55, 1
    %v57 = vadd.f32 %v55, %v56
    %v58 = vsel %vm48, %v34, 0.0
    %v59 = vsel %vm48, %v35, 0.0
    %v60 = vadd.f32 %v58, %v59
    %v61 = vrot.slane %v60, 4
    %v62 = vadd.f32 %v60, %v61
    %v63 = vrot.slane %v62, 2
    %v64 = vadd.f32 %v62, %v63
    %v65 = vrot.slane %v64, 1
    %v66 = vadd.f32 %v64, %v65
    %v67 = vsel %vm48, %v36, 0.0
    %v68 = vsel %vm48, %v37, 0.0
    %v69 = vadd.f32 %v67, %v68
    %v70 = vrot.slane %v69, 4
    %v71 = vadd.f32 %v69, %v70
    %v72 = vrot.slane %v71, 2
    %v73 = vadd.f32 %v71, %v72
    %v74 = vrot.slane %v73, 1
    %v75 = vadd.f32 %v73, %v74
    %v76 = vsel %vm48, %v38, 0.0
    %v77 = vsel %vm48, %v39, 0.0
    %v78 = vadd.f32 %v76, %v77
    %v79 = vrot.slane %v78, 4
    %v80 = vadd.f32 %v78, %v79
    %v81 = vrot.slane %v80, 2
    %v82 = vadd.f32 %v80, %v81
    %v83 = vrot.slane %v82, 1
    %v84 = vadd.f32 %v82, %v83
    %v85 = vsel %vm48, %v40, 0.0
    %v86 = vsel %vm48, %v41, 0.0
    %v87 = vadd.f32 %v85, %v86
    %v88 = vrot.slane %v87, 4
    %v89 = vadd.f32 %v87, %v88
    %v90 = vrot.slane %v89, 2
    %v91 = vadd.f32 %v89, %v90
    %v92 = vrot.slane %v91, 1
    %v93 = vadd.f32 %v91, %v92
    %v94 = vsel %vm48, %v42, 0.0
    %v95 = vsel %vm48, %v43, 0.0
    %v96 = vadd.f32 %v94, %v95
    %v97 = vrot.slane %v96, 4
    %v98 = vadd.f32 %v96, %v97
    %v99 = vrot.slane %v98, 2
    %v100 = vadd.f32 %v98, %v99
    %v101 = vrot.slane %v100, 1
    %v102 = vadd.f32 %v100, %v101
    %v103 = vsel %vm48, %v44, 0.0
    %v104 = vsel %vm48, %v45, 0.0
    %v105 = vadd.f32 %v103, %v104
    %v106 = vrot.slane %v105, 4
    %v107 = vadd.f32 %v105, %v106
    %v108 = vrot.slane %v107, 2
    %v109 = vadd.f32 %v107, %v108
    %v110 = vrot.slane %v109, 1
    %v111 = vadd.f32 %v109, %v110
    %v112 = vsel %vm48, %v46, 0.0
    %v113 = vsel %vm48, %v47, 0.0
    %v114 = vadd.f32 %v112, %v113
    %v115 = vrot.slane %v114, 4
    %v116 = vadd.f32 %v114, %v115
    %v117 = vrot.slane %v116, 2
    %v118 = vadd.f32 %v116, %v117
    %v119 = vrot.slane %v118, 1
    %v120 = vadd.f32 %v118, %v119
    %vm129 = vcmask 1041409
    %v130 = vsel %vm129, %v66, %v57
    %vm131 = vcmask 1042434
    %v132 = vsel %vm131, %v75, %v130
    %vm133 = vcmask 1043459
    %v134 = vsel %vm133, %v84, %v132
    %vm135 = vcmask 1044484
    %v136 = vsel %vm135, %v93, %v134
    %vm137 = vcmask 1045509
    %v138 = vsel %vm137, %v102, %v136
    %vm139 = vcmask 1046534
    %v140 = vsel %vm139, %v111, %v138
    %vm141 = vcmask 1047559
    %v142 = vsel %vm141, %v120, %v140
    %v144 = vadd.f32 %v31, %v142
    %145 = vst.msk [vmem:[#allocation2] sm:$0xff] %vm48, %v144
    // Predicated region
    $region14: #{tpu_custom_call.1} parent=1 // pred_check
      %p146 = pneg %p25
    $region15: #{tpu_custom_call.1} parent=1 // pred_check_branch
      %148 = sbr.rel (%p146) target = $region17
    $region16: #{tpu_custom_call.1} parent=1 // pred_region
      %v149 = vld [vmem:[#allocation2] sm:$0xff]
      %v150 = vmul.f32 %v149, 0.0625
      %151 = vst.msk [vmem:[#allocation6] sm:$0xff] %vm48, %v150
    $region17: #{tpu_custom_call.1} parent=1 // pred_fallthru
      _
    // Predicated region
    $region18: #{tpu_custom_call.1} parent=1 // pred_check
      _
    $region19: #{tpu_custom_call.1} parent=1 // pred_check_branch
      %153 = sbr.rel (0) target = $region21
    $region20: #{tpu_custom_call.1} parent=1 // pred_region
      %155 = vsyncadd [#allocation5], 0
      %s157 = sshll.u32 [#allocation6], 4
      %s158 = int_to_ptr.vmem [resolvable:$true] %s157
      %s159 = sshll.u32 %s1, 4
      %s160 = int_to_ptr.hbm [resolvable:$true] %s159
      %162 = dma.vmem_to_hbm [thread:$0]  %s158, 128, %s160, [#allocation5]
    $region21: #{tpu_custom_call.1} parent=1 // pred_fallthru
      _
    // Predicated region
    $region22: #{tpu_custom_call.1} parent=1 // pred_check
      _
    $region23: #{tpu_custom_call.1} parent=1 // pred_check_branch
      %164 = sbr.rel (0) target = $region25
    $region24: #{tpu_custom_call.1} parent=1 // pred_region
      %166 = dma.done [#allocation5], 128
    $region25: #{tpu_custom_call.1} parent=1 // pred_fallthru
      _
    %167 = vsyncpa [#allocation4], 1
    %168 = vsyncpa [#allocation5], 1

</llo_original>
